<compile_context>
chip_gen: v7x
topology: tpu7x:2x2x1
jax: 0.10.0
libtpu: 0.0.40
codegen_flags: <defaults>
</compile_context>

<pallas_src>
import functools

import jax
import jax.numpy as jnp
from jax import lax
from jax.experimental import pallas as pl
from jax.experimental.pallas import tpu as pltpu

_LANE = 128


# ----------------------------------------------------------------------------
# Device VMEM capacity (with a conservative fallback) and tile-size heuristic.
# ----------------------------------------------------------------------------
def _vmem_capacity_bytes():
    try:
        cap = int(pltpu.get_tpu_info().vmem_capacity_bytes)
        if cap > 0:
            return cap
    except Exception:
        pass
    return 64 * 1024 * 1024          # conservative (v7x-sized) fallback


def _lane_pad(x):
    return ((x + _LANE - 1) // _LANE) * _LANE


def _pick_tile_n(n_pad, *, c, ci, io_itemsize, budget, requested=None, cap_tj=2048):
    """Largest key tile tj (multiple of 128 dividing n_pad) whose per-step
    VMEM footprint fits `budget`.  The softmax chain scales O(n_pad * tj)."""
    fixed = (n_pad * _lane_pad(ci) * 2            # theta scratch (lane-padded, bf16)
             + n_pad * _lane_pad(ci) * 4          # acc scratch (lane-padded, f32)
             + 2 * c * n_pad * io_itemsize        # supp block, double-buffered
             + 2 * c * n_pad * io_itemsize        # out block, double-buffered
             + (2 << 20))                         # weights + slack

    def per_tj(t):                                # f_blk / e chain + pg tiles
        return int(2.5 * n_pad * t * 4) + 2 * 2 * ci * t * io_itemsize

    if requested is None:
        cap = min(n_pad, cap_tj)
    else:
        cap = min(n_pad, requested)
    cap = max(_LANE, (cap // _LANE) * _LANE)

    t = cap
    while t > _LANE:
        if n_pad % t == 0 and fixed + per_tj(t) <= budget:
            return t
        t -= _LANE
    # TODO(synk): if even tj=128 exceeds budget (huge N on v7x) query-axis
    #             tiling would be required; fall back to 128 and let the
    #             compiler decide.
    return _LANE


# ----------------------------------------------------------------------------
# Stage 1: project the ref frame once per (b, key tile):  phi = Wp@y + bp,
# g = Wg@y + bg.  Shared by every supp frame (de-dups (P-1) re-projections).
# ----------------------------------------------------------------------------
def _ref_proj_kernel(frames_ref, phw_ref, phb_ref, gw_ref, gb_ref, o_ref):
    x = frames_ref[0, 0]                                           # (C, tj)
    phi = jnp.dot(phw_ref[...], x, preferred_element_type=jnp.float32) + phb_ref[...]
    g = jnp.dot(gw_ref[...], x, preferred_element_type=jnp.float32) + gb_ref[...]
    o_ref[0, 0] = phi.astype(o_ref.dtype)
    o_ref[0, 1] = g.astype(o_ref.dtype)


# ----------------------------------------------------------------------------
# Stage 2: fused non-local attention.
#   grid = (P supp-frames, B, N // tj key tiles)  ("parallel","parallel","arbitrary")
#   f[i, jj] = theta(supp)[i] . phi(ref)[jj]; torch softmax(dim=1) normalizes
#   over the query axis i, fully present per key tile -> exact per tile.
#   x1 is accumulated in an (N, Ci) f32 scratch across key tiles.
# ----------------------------------------------------------------------------
def _nonlocal_attn_kernel(fidx_ref,                 # scalar-prefetch frame ids (used by index maps)
                          supp_ref,                 # (1,1,C,Np) io_dtype, constant over j
                          pg_ref,                   # (1,2,Ci,tj) io_dtype: [phi; g] ref tile
                          tw_ref, tb_ref,           # theta : (Ci,C) bf16, (Ci,1) f32
                          ww_ref, wb_ref,           # W     : (C,Ci) bf16, (C,1) f32
                          o_ref,                    # (1,1,C,Np)
                          theta_ref, acc_ref,       # scratch: (Np,Ci) bf16, (Np,Ci) f32
                          *, inter_channels, n_real, n_pad, tile_n, mxu_dtype):
    del inter_channels
    j = pl.program_id(2)

    @pl.when(j == 0)
    def _init():
        # theta = Wt @ x (1x1 conv) once per (p, b); stored query-major (Np, Ci).
        x = supp_ref[0, 0]                                          # (C, Np) bf16
        th = jnp.dot(tw_ref[...], x, preferred_element_type=jnp.float32) + tb_ref[...]
        theta_ref[...] = jnp.transpose(th).astype(mxu_dtype)
        acc_ref[...] = jnp.zeros_like(acc_ref)

    phi = pg_ref[0, 0]                                              # (Ci, tj) bf16
    g = pg_ref[0, 1]                                                # (Ci, tj) bf16

    # Affinity block (queries x key tile), bf16 MXU operands, f32 accumulation.
    f_blk = jnp.dot(theta_ref[...], phi, preferred_element_type=jnp.float32)  # (Np, tj)

    if n_real != n_pad:
        # Padded QUERY rows must not contribute to the column softmax sums.
        qmask = lax.broadcasted_iota(jnp.int32, (n_pad, 1), 0) < n_real
        f_blk = jnp.where(qmask, f_blk, jnp.float32(-1e30))

    # Exact column softmax (torch dim=1), f32 elementwise math.  The 1/colsum
    # is folded into the small (Ci, tj) g operand instead of the (Np, tj) probs.
    m = jnp.max(f_blk, axis=0, keepdims=True)
    e = jnp.exp(f_blk - m)
    colsum = jnp.sum(e, axis=0, keepdims=True)                      # (1, tj)
    g_scaled = g.astype(jnp.float32) * pl.reciprocal(colsum, approx=True)

    if n_real != n_pad:
        # Padded KEY columns must not contribute to acc for real queries.
        kmask = (j * tile_n
                 + lax.broadcasted_iota(jnp.int32, (1, tile_n), 1)) < n_real
        g_scaled = jnp.where(kmask, g_scaled, 0.0)

    # acc[i, c] += sum_jj e[i, jj] * g_scaled[c, jj]   (MXU-native (M,K)x(K,N);
    # only the small (Ci, tj) operand is transposed per step).
    acc_ref[...] += jnp.dot(e.astype(mxu_dtype),
                            jnp.transpose(g_scaled).astype(mxu_dtype),
                            preferred_element_type=jnp.float32)

    @pl.when(j == pl.num_programs(2) - 1)
    def _finalize():
        x = supp_ref[0, 0].astype(jnp.float32)                      # (C, Np)
        acc_cn = jnp.transpose(acc_ref[...])                        # (Ci, Np), once per (p,b)
        w_x1 = jnp.dot(ww_ref[...], acc_cn.astype(mxu_dtype),
                       preferred_element_type=jnp.float32) + wb_ref[...]
        o_ref[0, 0] = (x + w_x1).astype(o_ref.dtype)                # residual


# ----------------------------------------------------------------------------
# pallas_call wrapper working on (B, F, C, N) frames (pure reshape of NCHW).
# ----------------------------------------------------------------------------
def _nonlocal_pallas(frames, supp_frames, ref_frame, params, *,
                     tile_n=None, mxu_dtype=jnp.bfloat16):
    B, F, C, N = frames.shape
    Ci = params["theta_w"].shape[0]
    supp_frames = list(supp_frames)
    P = len(supp_frames)
    frame_idx = jnp.asarray(supp_frames, dtype=jnp.int32)
    out_dtype = frames.dtype

    # bf16 frame I/O halves HBM traffic and the double-buffered supp/out blocks.
    io_dtype = mxu_dtype
    frames_k = frames.astype(io_dtype)

    # Pad spatial positions up to a lane multiple; padded keys/queries are
    # masked inside the kernel.
    n_pad = max(_LANE, _lane_pad(N))
    if n_pad != N:
        frames_k = jnp.pad(frames_k, ((0, 0), (0, 0), (0, 0), (0, n_pad - N)))

    cap = _vmem_capacity_bytes()
    budget = int(cap * 0.70)
    vmem_limit = int(min(cap * 0.80, cap - (8 << 20)))

    io_itemsize = jnp.dtype(io_dtype).itemsize
    tj = _pick_tile_n(n_pad, c=C, ci=Ci, io_itemsize=io_itemsize,
                      budget=budget, requested=tile_n)
    qj = n_pad // tj

    # Kernel-layout weights (torch conv layout is (out, in)); bf16 weights for
    # single-pass MXU matmuls, biases stay f32 and are added post-matmul.
    tw = params["theta_w"].astype(mxu_dtype)                        # (Ci, C)
    tb = params["theta_b"].reshape(Ci, 1).astype(jnp.float32)
    phw = params["phi_w"].astype(mxu_dtype)                         # (Ci, C)
    phb = params["phi_b"].reshape(Ci, 1).astype(jnp.float32)
    gw = params["g_w"].astype(mxu_dtype)                            # (Ci, C)
    gb = params["g_b"].reshape(Ci, 1).astype(jnp.float32)
    ww = params["W_w"].astype(mxu_dtype)                            # (C, Ci)
    wb = params["W_b"].reshape(C, 1).astype(jnp.float32)

    # ---- Stage 1: ref-frame phi/g projection, computed once per (b, tile). ----
    pg_ref_all = pl.pallas_call(
        _ref_proj_kernel,
        out_shape=jax.ShapeDtypeStruct((B, 2, Ci, n_pad), io_dtype),
        grid_spec=pltpu.PrefetchScalarGridSpec(
            num_scalar_prefetch=0,
            grid=(B, qj),
            in_specs=[
                pl.BlockSpec((1, 1, C, tj), lambda b, j: (b, ref_frame, 0, j)),
                pl.BlockSpec((Ci, C), lambda b, j: (0, 0)),
                pl.BlockSpec((Ci, 1), lambda b, j: (0, 0)),
                pl.BlockSpec((Ci, C), lambda b, j: (0, 0)),
                pl.BlockSpec((Ci, 1), lambda b, j: (0, 0)),
            ],
            out_specs=pl.BlockSpec((1, 2, Ci, tj), lambda b, j: (b, 0, 0, j)),
        ),
        compiler_params=pltpu.CompilerParams(
            dimension_semantics=("parallel", "parallel"),
            vmem_limit_bytes=vmem_limit),
    )(frames_k, phw, phb, gw, gb)

    # ---- Stage 2: fused non-local attention. ----
    kernel = functools.partial(_nonlocal_attn_kernel, inter_channels=Ci,
                               n_real=N, n_pad=n_pad, tile_n=tj,
                               mxu_dtype=mxu_dtype)

    out = pl.pallas_call(
        kernel,
        out_shape=jax.ShapeDtypeStruct((B, P, C, n_pad), io_dtype),
        grid_spec=pltpu.PrefetchScalarGridSpec(
            num_scalar_prefetch=1,
            grid=(P, B, qj),
            in_specs=[
                # supp frame: full spatial, picked via scalar-prefetch frame id,
                # constant across j (kept resident, no per-step re-DMA).
                pl.BlockSpec((1, 1, C, n_pad), lambda p, b, j, fidx: (b, fidx[p], 0, 0)),
                # pre-projected [phi; g] ref key tile.
                pl.BlockSpec((1, 2, Ci, tj), lambda p, b, j, fidx: (b, 0, 0, j)),
                pl.BlockSpec((Ci, C), lambda p, b, j, fidx: (0, 0)),
                pl.BlockSpec((Ci, 1), lambda p, b, j, fidx: (0, 0)),
                pl.BlockSpec((C, Ci), lambda p, b, j, fidx: (0, 0)),
                pl.BlockSpec((C, 1), lambda p, b, j, fidx: (0, 0)),
            ],
            out_specs=pl.BlockSpec((1, 1, C, n_pad), lambda p, b, j, fidx: (b, p, 0, 0)),
            scratch_shapes=[
                pltpu.VMEM((n_pad, Ci), mxu_dtype),      # theta (query projections)
                pltpu.VMEM((n_pad, Ci), jnp.float32),    # x1 accumulator
            ],
        ),
        compiler_params=pltpu.CompilerParams(
            dimension_semantics=("parallel", "parallel", "arbitrary"),
            vmem_limit_bytes=vmem_limit),
    )(frame_idx, frames_k, pg_ref_all, tw, tb, ww, wb)

    if n_pad != N:
        out = out[..., :N]
    if out.dtype != out_dtype:
        out = out.astype(out_dtype)
    return out                                                      # (B, P, C, N)


def nonlocal_block_pallas(supp_nchw, ref_nchw, params, **kw):
    """NonLocalBlock.forward(supp_feature, ref_feature) — NCHW in / NCHW out."""
    B, C, H, W = supp_nchw.shape
    frames = jnp.stack([supp_nchw, ref_nchw], axis=1).reshape(B, 2, C, H * W)
    out = _nonlocal_pallas(frames, [0], 1, params, **kw)            # (B, 1, C, N)
    return out.reshape(B, C, H, W)


# ----------------------------------------------------------------------------
# DNLN.align(): only the non-local step is translatable from the given source.
# ----------------------------------------------------------------------------
def dnln_align_nonlocal(flames_feature, params, *, tile_n=None, mxu_dtype=jnp.bfloat16):
    """flames_feature: (B, num, C, H, W).  Mirrors DNLN.align minus the
    deformable-alignment stages (fuse_layers / HFFB / DeformConv source not
    provided)."""
    B, num, C, H, W = flames_feature.shape
    center = num // 2
    frames = flames_feature.reshape(B, num, C, H * W)               # pure reshape
    supp_frames = [i for i in range(num) if i != center]
    # TODO(synk): fuse_layers[j] + HFFBs[j] + dconvs[j] (DeformConv) loop omitted — no source.
    out = _nonlocal_pallas(frames, supp_frames, center, params,
                           tile_n=tile_n, mxu_dtype=mxu_dtype)
    out = out.reshape(B, len(supp_frames), C, H, W)
    feats, pi = [], 0
    for i in range(num):
        if i == center:
            feats.append(flames_feature[:, i])
        else:
            feats.append(out[:, pi])
            pi += 1
    return jnp.concatenate(feats, axis=1)                           # torch.cat(a_feature, dim=1)


# ----------------------------------------------------------------------------
# Deterministic parameters (torch Conv2d (out, in) layout).
# ----------------------------------------------------------------------------
def make_nonlocal_params(key, in_channels, inter_channels, zero_W=True):
    ks = jax.random.split(key, 8)
    p = {
        "theta_w": 0.1 * jax.random.normal(ks[0], (inter_channels, in_channels), jnp.float32),
        "theta_b": 0.1 * jax.random.normal(ks[1], (inter_channels,), jnp.float32),
        "phi_w":   0.1 * jax.random.normal(ks[2], (inter_channels, in_channels), jnp.float32),
        "phi_b":   0.1 * jax.random.normal(ks[3], (inter_channels,), jnp.float32),
        "g_w":     0.1 * jax.random.normal(ks[4], (inter_channels, in_channels), jnp.float32),
        "g_b":     0.1 * jax.random.normal(ks[5], (inter_channels,), jnp.float32),
    }
    if zero_W:
        # faithful to nn.init.constant_(self.W.weight, 0) / constant_(bias, 0)
        p["W_w"] = jnp.zeros((in_channels, inter_channels), jnp.float32)
        p["W_b"] = jnp.zeros((in_channels,), jnp.float32)
    else:
        p["W_w"] = 0.1 * jax.random.normal(ks[6], (in_channels, inter_channels), jnp.float32)
        p["W_b"] = 0.1 * jax.random.normal(ks[7], (in_channels,), jnp.float32)
    return p


# ----------------------------------------------------------------------------
# Pure-JAX references (mirror the torch code) for cross-checking.
# ----------------------------------------------------------------------------
def nonlocal_block_ref(x_nchw, y_nchw, params):
    B, C, H, W = x_nchw.shape
    N = H * W
    xf = jnp.transpose(x_nchw.reshape(B, C, N), (0, 2, 1))          # (B, N, C)
    yf = jnp.transpose(y_nchw.reshape(B, C, N), (0, 2, 1))
    theta = xf @ params["theta_w"].T + params["theta_b"]
    phi = yf @ params["phi_w"].T + params["phi_b"]
    g = yf @ params["g_w"].T + params["g_b"]
    f = jnp.einsum("bic,bjc->bij", theta, phi)
    f_div_c = jax.nn.softmax(f, axis=1)                             # torch dim=1
    x1 = jnp.einsum("bij,bjc->bic", f_div_c, g)
    w_x1 = x1 @ params["W_w"].T + params["W_b"]
    z = xf + w_x1
    return jnp.transpose(z, (0, 2, 1)).reshape(B, C, H, W)


def dnln_align_nonlocal_ref(flames_feature, params):
    B, num, C, H, W = flames_feature.shape
    center = num // 2
    ref = flames_feature[:, center]
    feats = []
    for i in range(num):
        if i == center:
            feats.append(ref)
        else:
            feats.append(nonlocal_block_ref(flames_feature[:, i], ref, params))
    return jnp.concatenate(feats, axis=1)


if __name__ == "__main__":
    key = jax.random.PRNGKey(0)
    k_feat, k_par, k_feat2 = jax.random.split(key, 3)

    # Small shapes consistent with the module: batch=2, num_frames=3,
    # n_feats=16 (inter_channels = n_feats // 2 = 8), spatial 16x16 -> N=256,
    # with tile_n=128 so the key-tiled accumulation path is exercised.
    B, num, n_feats, H, W = 2, 3, 16, 16, 16
    inter = n_feats // 2

    flames_feature = jax.random.normal(k_feat, (B, num, n_feats, H, W), jnp.float32)

    # Faithful params (W zero-init as in the PyTorch __init__).
    params0 = make_nonlocal_params(k_par, n_feats, inter, zero_W=True)
    aligned = dnln_align_nonlocal(flames_feature, params0, tile_n=128)
    jax.block_until_ready(aligned)
    assert aligned.shape == (B, num * n_feats, H, W)

    # Kernel-math validation with a non-trivial W projection against pure JAX.
    # Tolerance covers bf16 frames/weights + bf16 MXU operands + approx recip.
    params = make_nonlocal_params(k_par, n_feats, inter, zero_W=False)
    out_p = dnln_align_nonlocal(flames_feature, params, tile_n=128)
    out_r = dnln_align_nonlocal_ref(flames_feature, params)
    jax.block_until_ready(out_p)
    jax.block_until_ready(out_r)
    assert jnp.allclose(out_p, out_r, atol=3e-2, rtol=3e-2)

    # Single NonLocalBlock path.
    supp = flames_feature[:, 0]
    ref = flames_feature[:, num // 2]
    blk_p = nonlocal_block_pallas(supp, ref, params, tile_n=128)
    blk_r = nonlocal_block_ref(supp, ref, params)
    jax.block_until_ready(blk_p)
    assert jnp.allclose(blk_p, blk_r, atol=3e-2, rtol=3e-2)

    # Non-128-aligned spatial size: N=144 -> padded to 256; exercises the
    # padded-query / padded-key masking path with two key tiles.
    Hs = Ws = 12
    flames_small = jax.random.normal(k_feat2, (1, num, n_feats, Hs, Ws), jnp.float32)
    out_ps = dnln_align_nonlocal(flames_small, params, tile_n=128)
    out_rs = dnln_align_nonlocal_ref(flames_small, params)
    jax.block_until_ready(out_ps)
    assert out_ps.shape == (1, num * n_feats, Hs, Ws)
    assert jnp.allclose(out_ps, out_rs, atol=3e-2, rtol=3e-2)

    print("KERNEL_OK")
</pallas_src>

<mosaic_0001>
module attributes {stable_mosaic.version = 11 : i64} {
  func.func @_ref_proj_kernel(%arg0: i32, %arg1: i32, %arg2: memref<1x1x16x128xbf16, #tpu.memory_space<vmem>>, %arg3: memref<8x16xbf16, #tpu.memory_space<vmem>>, %arg4: memref<8x1xf32, #tpu.memory_space<vmem>>, %arg5: memref<8x16xbf16, #tpu.memory_space<vmem>>, %arg6: memref<8x1xf32, #tpu.memory_space<vmem>>, %arg7: memref<1x2x8x128xbf16, #tpu.memory_space<vmem>>) attributes {dimension_semantics = [#tpu.dimension_semantics<parallel>, #tpu.dimension_semantics<parallel>], iteration_bounds = array<i64: 2, 2>, scalar_prefetch = 0 : i64, scratch_operands = 0 : i64, tpu.core_type = #tpu.core_type<tc>, window_params = [{transform_indices = @transform_0, window_bounds = array<i64: 1, 1, 16, 128>}, {pipeline_mode = #tpu.pipeline_mode<synchronous>, transform_indices = @transform_1, window_bounds = array<i64: 8, 16>}, {pipeline_mode = #tpu.pipeline_mode<synchronous>, transform_indices = @transform_2, window_bounds = array<i64: 8, 1>}, {pipeline_mode = #tpu.pipeline_mode<synchronous>, transform_indices = @transform_3, window_bounds = array<i64: 8, 16>}, {pipeline_mode = #tpu.pipeline_mode<synchronous>, transform_indices = @transform_4, window_bounds = array<i64: 8, 1>}, {transform_indices = @transform_5, window_bounds = array<i64: 1, 2, 8, 128>}]} {
    %c0 = arith.constant 0 : index
    %c0_0 = arith.constant 0 : index
    %c0_1 = arith.constant 0 : index
    %c0_2 = arith.constant 0 : index
    %0 = vector.load %arg2[%c0, %c0_0, %c0_1, %c0_2] : memref<1x1x16x128xbf16, #tpu.memory_space<vmem>>, vector<1x1x16x128xbf16>
    %1 = vector.shape_cast %0 : vector<1x1x16x128xbf16> to vector<16x128xbf16>
    %c0_3 = arith.constant 0 : index
    %c0_4 = arith.constant 0 : index
    %2 = vector.load %arg3[%c0_3, %c0_4] : memref<8x16xbf16, #tpu.memory_space<vmem>>, vector<8x16xbf16>
    %cst = arith.constant dense<0.000000e+00> : vector<8x128xf32>
    %3 = tpu.matmul %2, %1, %cst {dimension_numbers = #tpu.dot_dimension_numbers<[1], [0], [0], [1], [0, 0, 1, 1], [], []>} : vector<8x16xbf16>, vector<16x128xbf16>, vector<8x128xf32> -> vector<8x128xf32>
    %c0_5 = arith.constant 0 : index
    %c0_6 = arith.constant 0 : index
    %4 = vector.load %arg4[%c0_5, %c0_6] : memref<8x1xf32, #tpu.memory_space<vmem>>, vector<8x1xf32>
    %5 = vector.broadcast %4 : vector<8x1xf32> to vector<8x128xf32>
    %6 = arith.addf %3, %5 : vector<8x128xf32>
    %c0_7 = arith.constant 0 : index
    %c0_8 = arith.constant 0 : index
    %7 = vector.load %arg5[%c0_7, %c0_8] : memref<8x16xbf16, #tpu.memory_space<vmem>>, vector<8x16xbf16>
    %cst_9 = arith.constant dense<0.000000e+00> : vector<8x128xf32>
    %8 = tpu.matmul %7, %1, %cst_9 {dimension_numbers = #tpu.dot_dimension_numbers<[1], [0], [0], [1], [0, 0, 1, 1], [], []>} : vector<8x16xbf16>, vector<16x128xbf16>, vector<8x128xf32> -> vector<8x128xf32>
    %c0_10 = arith.constant 0 : index
    %c0_11 = arith.constant 0 : index
    %9 = vector.load %arg6[%c0_10, %c0_11] : memref<8x1xf32, #tpu.memory_space<vmem>>, vector<8x1xf32>
    %10 = vector.broadcast %9 : vector<8x1xf32> to vector<8x128xf32>
    %11 = arith.addf %8, %10 : vector<8x128xf32>
    %12 = arith.truncf %6 : vector<8x128xf32> to vector<8x128xbf16>
    %c0_12 = arith.constant 0 : index
    %c0_13 = arith.constant 0 : index
    %c0_14 = arith.constant 0 : index
    %c0_15 = arith.constant 0 : index
    %13 = vector.load %arg7[%c0_12, %c0_13, %c0_14, %c0_15] : memref<1x2x8x128xbf16, #tpu.memory_space<vmem>>, vector<1x1x8x128xbf16>
    %14 = vector.shape_cast %13 : vector<1x1x8x128xbf16> to vector<8x128xbf16>
    %15 = vector.shape_cast %12 : vector<8x128xbf16> to vector<1x1x8x128xbf16>
    tpu.vector_store %arg7[%c0_12, %c0_13, %c0_14, %c0_15], %15 {strides = array<i32>} : memref<1x2x8x128xbf16, #tpu.memory_space<vmem>>, vector<1x1x8x128xbf16>,
    %16 = arith.truncf %11 : vector<8x128xf32> to vector<8x128xbf16>
    %c0_16 = arith.constant 0 : index
    %c1 = arith.constant 1 : index
    %c0_17 = arith.constant 0 : index
    %c0_18 = arith.constant 0 : index
    %17 = vector.load %arg7[%c0_16, %c1, %c0_17, %c0_18] : memref<1x2x8x128xbf16, #tpu.memory_space<vmem>>, vector<1x1x8x128xbf16>
    %18 = vector.shape_cast %17 : vector<1x1x8x128xbf16> to vector<8x128xbf16>
    %19 = vector.shape_cast %16 : vector<8x128xbf16> to vector<1x1x8x128xbf16>
    tpu.vector_store %arg7[%c0_16, %c1, %c0_17, %c0_18], %19 {strides = array<i32>} : memref<1x2x8x128xbf16, #tpu.memory_space<vmem>>, vector<1x1x8x128xbf16>,
    return
  }
  func.func @transform_0(%arg0: i32, %arg1: i32) -> (i32, i32, i32, i32) {
    %c1_i32 = arith.constant 1 : i32
    %c0_i32 = arith.constant 0 : i32
    %c0_i32_0 = arith.constant 0 : i32
    return %arg0, %c1_i32, %c0_i32, %arg1 : i32, i32, i32, i32
  }
  func.func @transform_1(%arg0: i32, %arg1: i32) -> (i32, i32) {
    %c0_i32 = arith.constant 0 : i32
    %c0_i32_0 = arith.constant 0 : i32
    %c0_i32_1 = arith.constant 0 : i32
    return %c0_i32, %c0_i32_0 : i32, i32
  }
  func.func @transform_2(%arg0: i32, %arg1: i32) -> (i32, i32) {
    %c0_i32 = arith.constant 0 : i32
    %c0_i32_0 = arith.constant 0 : i32
    %c0_i32_1 = arith.constant 0 : i32
    return %c0_i32, %c0_i32_0 : i32, i32
  }
  func.func @transform_3(%arg0: i32, %arg1: i32) -> (i32, i32) {
    %c0_i32 = arith.constant 0 : i32
    %c0_i32_0 = arith.constant 0 : i32
    %c0_i32_1 = arith.constant 0 : i32
    return %c0_i32, %c0_i32_0 : i32, i32
  }
  func.func @transform_4(%arg0: i32, %arg1: i32) -> (i32, i32) {
    %c0_i32 = arith.constant 0 : i32
    %c0_i32_0 = arith.constant 0 : i32
    %c0_i32_1 = arith.constant 0 : i32
    return %c0_i32, %c0_i32_0 : i32, i32
  }
  func.func @transform_5(%arg0: i32, %arg1: i32) -> (i32, i32, i32, i32) {
    %c0_i32 = arith.constant 0 : i32
    %c0_i32_0 = arith.constant 0 : i32
    %c0_i32_1 = arith.constant 0 : i32
    return %arg0, %c0_i32, %c0_i32_0, %arg1 : i32, i32, i32, i32
  }
}

</mosaic_0001>

<llo_original>
// kernel: tpu_custom_call.1
$region0: #{tpu_custom_call.1}
  #allocation0 [shape = 'u32[]', space=smem, size = 0x4, offset = 0x4, fixed_abs, tag = 'smem constant byte address 0x4 - core index']
  #allocation1 [shape = 'u32[144,128]{1,0:T(1,128)}', space=vmem, size = 0x12000, scoped, tag = 'internal scratch']
  %s0 = inlined_call_operand.hbm [shape: bf16[2,3,16,256], index: 0, kind: input, shape index: {}]
  %s1 = inlined_call_operand.vmem [shape: bf16[8,16], index: 1, kind: input, shape index: {}]
  %s2 = inlined_call_operand.vmem [shape: f32[8,1], index: 2, kind: input, shape index: {}]
  %s3 = inlined_call_operand.vmem [shape: bf16[8,16], index: 3, kind: input, shape index: {}]
  %s4 = inlined_call_operand.vmem [shape: f32[8,1], index: 4, kind: input, shape index: {}]
  %s5 = inlined_call_operand.hbm [shape: bf16[2,2,8,256], index: 5, kind: output, shape index: {}]
  %s6 = sld [smem:[#allocation0]]
  $region57: #{tpu_custom_call.1} parent=0
    _
  %s8 = ssub.s32 1, %s6
  %s9 = scalar_select 0, %s8, %s6
  $region1: #{tpu_custom_call.1} parent=0
    #allocation2 [shape = 'u8[8192]{0}', space=vmem, size = 0x2000, scoped, tag = 'input window, operand 0']
    #allocation3 [shape = 's32[2]{0}', space=sflag, size = 0x8, scoped, tag = 'scoped memory for tpu_custom_call.1']
    #allocation4 [shape = 's32[2]{0}', space=sflag, size = 0x8, scoped, tag = 'scoped memory for tpu_custom_call.1']
    #allocation5 [shape = 'u8[8192]{0}', space=vmem, size = 0x2000, scoped, tag = 'output window, operand 0']
    %10 = vsyncpa [#allocation3], 0
    %s11 = scalar_lea.sflag [#allocation3], 1
    %12 = vsyncpa %s11, 0
    %13 = vsyncpa [#allocation4], 0
    %s14 = scalar_lea.sflag [#allocation4], 1
    %15 = vsyncpa %s14, 0
    loop: start=0, step=1, limit=6
    $region2: #{tpu_custom_call.1} parent=1 // loop_pre_header
      _
    $region3: #{tpu_custom_call.1} parent=1 // loop_header
      %s17 = sphi 0, %s21
      %p18 = scmp.ge.s32.totalorder %s17, 6
      %s24 = sphi 0, %s36
      %s25 = sphi 0, %s32
      %s26 = sphi 0, %s24
      %s27 = sphi 0, %s25
      %s28 = sphi 0, %s26
      %s29 = sphi 0, %s27
      %s41 = sphi 0, %s43
      %s44 = sphi 0, %s41
      %s45 = sphi 0, %s44
      %s61 = sphi 0, %s45
      %s65 = sphi 0, %s65
      %s67 = sphi 0, %s65
      %s68 = sphi 0, %s67
      %s82 = sphi 0, %s68
      %s86 = sphi 0, %s86
      %s88 = sphi 0, %s86
      %s89 = sphi 0, %s88
      %s103 = sphi 0, %s89
      %s107 = sphi 0, %s107
      %s109 = sphi 0, %s107
      %s110 = sphi 0, %s109
      %s124 = sphi 0, %s110
      %s128 = sphi 0, %s128
      %s130 = sphi 0, %s128
      %s131 = sphi 0, %s130
      %s145 = sphi 0, %s131
      %s153 = sphi 0, %s155
      %s156 = sphi 0, %s153
      %s157 = sphi 0, %s156
      %s173 = sphi 0, %s157
    $region4: #{tpu_custom_call.1} parent=1 // loop_header_branch
      %20 = sbr.rel (%p18) target = $region8
    $region5: #{tpu_custom_call.1} parent=1 // loop_body
      %s22 = ssub.s32 %s17, 1
      %s23 = ssub.s32 %s17, 2
      %s30 = sadd.s32 1, %s25
      %p31 = scmp.ge.s32.totalorder %s30, 2
      %s32 = scalar_select %p31, 0, %s30
      %s33 = sadd.s32 1, %s24
      %s34 = scalar_select %p31, %s33, %s24
      %p35 = scmp.ge.s32.totalorder %s34, 2
      %s36 = scalar_select %p35, 0, %s34
      %s37 = ssub.s32 %s24, %s36
      %s38 = ssub.s32 %s25, %s32
      %s39 = sor.u32 %s37, %s38
      %p40 = scmp.eq.s32.totalorder %s39, 0
      %s42 = sadd.s32 %s41, 1
      %s43 = scalar_select %p40, %s41, %s42
      %p46 = pneg %p40
      %p47 = scmp.eq.s32.totalorder %s17, 3
      %p48 = por %p46, %p47
      %p49 = scmp.ne.s32.totalorder %s41, %s44
      %p50 = scmp.eq.s32.totalorder %s17, 0
      %p51 = por %p49, %p50
      %p52 = scmp.ne.s32.totalorder %s41, %s44
      %p53 = scmp.eq.s32.totalorder %s22, 3
      %p54 = por %p52, %p53
      %p55 = scmp.ne.s32.totalorder %s44, %s45
      %p56 = scmp.eq.s32.totalorder %s22, 0
      %p57 = por %p55, %p56
      %p58 = scmp.ne.s32.totalorder %s44, %s45
      %p59 = scmp.eq.s32.totalorder %s23, 3
      %p60 = por %p58, %p59
      %p62 = scmp.ne.s32.totalorder %s45, %s61
      %p63 = scmp.eq.s32.totalorder %s23, 0
      %p64 = por %p62, %p63
      %s66 = sadd.s32 %s65, 1
      %p69 = scmp.eq.s32.totalorder %s17, 3
      %p70 = scmp.ne.s32.totalorder %s65, %s67
      %p71 = scmp.eq.s32.totalorder %s17, 0
      %p72 = por %p70, %p71
      %p73 = scmp.ne.s32.totalorder %s65, %s67
      %p74 = scmp.eq.s32.totalorder %s22, 3
      %p75 = por %p73, %p74
      %p76 = scmp.ne.s32.totalorder %s67, %s68
      %p77 = scmp.eq.s32.totalorder %s22, 0
      %p78 = por %p76, %p77
      %p79 = scmp.ne.s32.totalorder %s67, %s68
      %p80 = scmp.eq.s32.totalorder %s23, 3
      %p81 = por %p79, %p80
      %p83 = scmp.ne.s32.totalorder %s68, %s82
      %p84 = scmp.eq.s32.totalorder %s23, 0
      %p85 = por %p83, %p84
      %s87 = sadd.s32 %s86, 1
      %p90 = scmp.eq.s32.totalorder %s17, 3
      %p91 = scmp.ne.s32.totalorder %s86, %s88
      %p92 = scmp.eq.s32.totalorder %s17, 0
      %p93 = por %p91, %p92
      %p94 = scmp.ne.s32.totalorder %s86, %s88
      %p95 = scmp.eq.s32.totalorder %s22, 3
      %p96 = por %p94, %p95
      %p97 = scmp.ne.s32.totalorder %s88, %s89
      %p98 = scmp.eq.s32.totalorder %s22, 0
      %p99 = por %p97, %p98
      %p100 = scmp.ne.s32.totalorder %s88, %s89
      %p101 = scmp.eq.s32.totalorder %s23, 3
      %p102 = por %p100, %p101
      %p104 = scmp.ne.s32.totalorder %s89, %s103
      %p105 = scmp.eq.s32.totalorder %s23, 0
      %p106 = por %p104, %p105
      %s108 = sadd.s32 %s107, 1
      %p111 = scmp.eq.s32.totalorder %s17, 3
      %p112 = scmp.ne.s32.totalorder %s107, %s109
      %p113 = scmp.eq.s32.totalorder %s17, 0
      %p114 = por %p112, %p113
      %p115 = scmp.ne.s32.totalorder %s107, %s109
      %p116 = scmp.eq.s32.totalorder %s22, 3
      %p117 = por %p115, %p116
      %p118 = scmp.ne.s32.totalorder %s109, %s110
      %p119 = scmp.eq.s32.totalorder %s22, 0
      %p120 = por %p118, %p119
      %p121 = scmp.ne.s32.totalorder %s109, %s110
      %p122 = scmp.eq.s32.totalorder %s23, 3
      %p123 = por %p121, %p122
      %p125 = scmp.ne.s32.totalorder %s110, %s124
      %p126 = scmp.eq.s32.totalorder %s23, 0
      %p127 = por %p125, %p126
      %s129 = sadd.s32 %s128, 1
      %p132 = scmp.eq.s32.totalorder %s17, 3
      %p133 = scmp.ne.s32.totalorder %s128, %s130
      %p134 = scmp.eq.s32.totalorder %s17, 0
      %p135 = por %p133, %p134
      %p136 = scmp.ne.s32.totalorder %s128, %s130
      %p137 = scmp.eq.s32.totalorder %s22, 3
      %p138 = por %p136, %p137
      %p139 = scmp.ne.s32.totalorder %s130, %s131
      %p140 = scmp.eq.s32.totalorder %s22, 0
      %p141 = por %p139, %p140
      %p142 = scmp.ne.s32.totalorder %s130, %s131
      %p143 = scmp.eq.s32.totalorder %s23, 3
      %p144 = por %p142, %p143
      %p146 = scmp.ne.s32.totalorder %s131, %s145
      %p147 = scmp.eq.s32.totalorder %s23, 0
      %p148 = por %p146, %p147
      %s149 = ssub.s32 %s24, %s36
      %s150 = ssub.s32 %s25, %s32
      %s151 = sor.u32 %s149, %s150
      %p152 = scmp.eq.s32.totalorder %s151, 0
      %s154 = sadd.s32 %s153, 1
      %s155 = scalar_select %p152, %s153, %s154
      %p158 = pneg %p152
      %p159 = scmp.eq.s32.totalorder %s17, 3
      %p160 = por %p158, %p159
      %p161 = scmp.ne.s32.totalorder %s153, %s156
      %p162 = scmp.eq.s32.totalorder %s17, 0
      %p163 = por %p161, %p162
      %p164 = scmp.ne.s32.totalorder %s153, %s156
      %p165 = scmp.eq.s32.totalorder %s22, 3
      %p166 = por %p164, %p165
      %p167 = scmp.ne.s32.totalorder %s156, %s157
      %p168 = scmp.eq.s32.totalorder %s22, 0
      %p169 = por %p167, %p168
      %p170 = scmp.ne.s32.totalorder %s156, %s157
      %p171 = scmp.eq.s32.totalorder %s23, 3
      %p172 = por %p170, %p171
      %p174 = scmp.ne.s32.totalorder %s157, %s173
      %p175 = scmp.eq.s32.totalorder %s23, 0
      %p176 = por %p174, %p175
      %p177 = scmp.le.s32.totalorder 1, %s17
      %p178 = scmp.lt.s32.totalorder %s17, 5
      %p179 = pnand %p177, %p178
      %p180 = pneg %p179
      // Predicated region
      $region9: #{tpu_custom_call.1} parent=5 // pred_check
        _
      $region10: #{tpu_custom_call.1} parent=5 // pred_check_branch
        %182 = sbr.rel (%p179) target = $region12
      $region11: #{tpu_custom_call.1} parent=5 // pred_region
        %s183 = ssub.s32 %s17, 1
        // Predicated region
        $region13: #{tpu_custom_call.1} parent=11 // pred_check
          %p184 = pneg %p78
        $region14: #{tpu_custom_call.1} parent=11 // pred_check_branch
          %186 = sbr.rel (%p184) target = $region16
        $region15: #{tpu_custom_call.1} parent=11 // pred_region
          _
        $region16: #{tpu_custom_call.1} parent=11 // pred_fallthru
          _
        // Predicated region
        $region17: #{tpu_custom_call.1} parent=11 // pred_check
          %p187 = pneg %p99
        $region18: #{tpu_custom_call.1} parent=11 // pred_check_branch
          %189 = sbr.rel (%p187) target = $region20
        $region19: #{tpu_custom_call.1} parent=11 // pred_region
          _
        $region20: #{tpu_custom_call.1} parent=11 // pred_fallthru
          _
        // Predicated region
        $region21: #{tpu_custom_call.1} parent=11 // pred_check
          %p190 = pneg %p120
        $region22: #{tpu_custom_call.1} parent=11 // pred_check_branch
          %192 = sbr.rel (%p190) target = $region24
        $region23: #{tpu_custom_call.1} parent=11 // pred_region
          _
        $region24: #{tpu_custom_call.1} parent=11 // pred_fallthru
          _
        // Predicated region
        $region25: #{tpu_custom_call.1} parent=11 // pred_check
          %p193 = pneg %p141
        $region26: #{tpu_custom_call.1} parent=11 // pred_check_branch
          %195 = sbr.rel (%p193) target = $region28
        $region27: #{tpu_custom_call.1} parent=11 // pred_region
          _
        $region28: #{tpu_custom_call.1} parent=11 // pred_fallthru
          _
      $region12: #{tpu_custom_call.1} parent=5 // pred_fallthru
        _
      %p196 = scmp.lt.s32.totalorder %s17, 4
      // Predicated region
      $region29: #{tpu_custom_call.1} parent=5 // pred_check
        %p197 = pneg %p196
      $region30: #{tpu_custom_call.1} parent=5 // pred_check_branch
        %199 = sbr.rel (%p197) target = $region32
      $region31: #{tpu_custom_call.1} parent=5 // pred_region
        // Predicated region
        $region33: #{tpu_custom_call.1} parent=31 // pred_check
          %p200 = pneg %p51
        $region34: #{tpu_custom_call.1} parent=31 // pred_check_branch
          %202 = sbr.rel (%p200) target = $region36
        $region35: #{tpu_custom_call.1} parent=31 // pred_region
          %s203 = sand.u32 %s41, 1
          %s204 = scalar_lea.sflag [#allocation3], %s203
          %s205 = sand.u32 %s41, 1
          %s206 = smul.addr %s205, 8
          %s207 = scalar_lea.vmem [#allocation2], %s206
          %s209 = ssub.s32 128, 128
          %210 = vsyncadd %s204, %s209
          %s211 = sadd.s32 %s25, 4
          %s212 = smul.addr %s24, 12
          %s213 = sadd.s32 %s211, %s212
          %s214 = smul.addr %s213, 64
          %s215 = scalar_lea.hbm %s0, %s214
          %s216 = sshll.u32 %s207, 4
          %s217 = int_to_ptr.vmem [resolvable:$true] %s216
          %222 = dma.hbm_to_vmem [thread:$0]  %s215, 128, %s217, %s204, 128, 64, 4
        $region36: #{tpu_custom_call.1} parent=31 // pred_fallthru
          _
      $region32: #{tpu_custom_call.1} parent=5 // pred_fallthru
        _
      %p223 = scmp.le.s32.totalorder 1, %s17
      %p224 = scmp.lt.s32.totalorder %s17, 5
      %p225 = pnand %p223, %p224
      %p226 = pneg %p225
      // Predicated region
      $region37: #{tpu_custom_call.1} parent=5 // pred_check
        _
      $region38: #{tpu_custom_call.1} parent=5 // pred_check_branch
        %228 = sbr.rel (%p225) target = $region40
      $region39: #{tpu_custom_call.1} parent=5 // pred_region
        %s229 = ssub.s32 %s17, 1
        %s230 = sand.u32 %s44, 1
        %s231 = scalar_lea.sflag [#allocation3], %s230
        %s232 = sand.u32 %s44, 1
        %s233 = smul.addr %s232, 8
        %s234 = scalar_lea.vmem [#allocation2], %s233
        // Predicated region
        $region41: #{tpu_custom_call.1} parent=39 // pred_check
          %p235 = pneg %p57
        $region42: #{tpu_custom_call.1} parent=39 // pred_check_branch
          %237 = sbr.rel (%p235) target = $region44
        $region43: #{tpu_custom_call.1} parent=39 // pred_region
          %238 = dma.done %s231, 128
        $region44: #{tpu_custom_call.1} parent=39 // pred_fallthru
          _
        %s239 = sand.u32 %s44, 1
        %s240 = scalar_lea.sflag [#allocation3], %s239
        %s241 = sand.u32 %s44, 1
        %s242 = smul.addr %s241, 8
        %s243 = scalar_lea.vmem [#allocation2], %s242
        %p244 = pneg %p57
        %p245 = pneg %p54
        %p246 = pneg %p78
        %p247 = pneg %p75
        %p248 = pneg %p99
        %p249 = pneg %p96
        %p250 = pneg %p120
        %p251 = pneg %p117
        %p252 = pneg %p141
        %p253 = pneg %p138
        %p254 = pneg %p169
        %p255 = pneg %p166
        %s256 = sand.u32 %s156, 1
        %s257 = scalar_lea.sflag [#allocation4], %s256
        %s258 = sand.u32 %s156, 1
        %s259 = smul.addr %s258, 8
        %s260 = scalar_lea.vmem [#allocation5], %s259
        %v262 = vld [vmem:[%s234] sm:$0xf]
        %v263 = vld [vmem:[%s234 + $0x4] sm:$0xf]
        %v264 = vld [vmem:[%s1] sm:$0xf]
        %v265 = vld [vmem:[%s2] sm:$0xff]
        %267 = vset.pattern.permute.xlu0 0
        %268 = vperm.xlu0 %267, %v265
        %v269 = vpop.permute.xlu0 %268
        %v273 = vunpack.c.l.b16 %v262
        %v274 = vunpack.c.l.b16 %v263
        %v275 = vpack.c.b16 %v274, %v273
        %vm277 = vcmask 130048
        %v279 = vsel %vm277, %v264, 0
        %281 = vmatprep.subr.bf16.mxu0 0
        %282 = vmatpush1.bf16.msra.mxu0 %v275
        %283 = vmatprep.subr.bf16.mxu0 0
        %284 = vmatpush1.bf16.msra.mxu0 0
        %285 = vmatprep.subr.bf16.mxu0 0
        %286 = vmatpush1.bf16.msra.mxu0 0
        %287 = vmatprep.subr.bf16.mxu0 0
        %288 = vmatpush1.bf16.msra.mxu0 0
        %289 = vmatprep.subr.bf16.mxu0 0
        %290 = vmatpush1.bf16.msra.mxu0 0
        %291 = vmatprep.subr.bf16.mxu0 0
        %292 = vmatpush1.bf16.msra.mxu0 0
        %293 = vmatprep.subr.bf16.mxu0 0
        %294 = vmatpush1.bf16.msra.mxu0 0
        %295 = vmatprep.subr.bf16.mxu0 0
        %296 = vmatpush1.bf16.msra.mxu0 0
        %297 = vmatprep.subr.bf16.mxu0 0
        %298 = vmatpush1.bf16.msra.mxu0 0
        %299 = vmatprep.subr.bf16.mxu0 0
        %300 = vmatpush1.bf16.msra.mxu0 0
        %301 = vmatprep.subr.bf16.mxu0 0
        %302 = vmatpush1.bf16.msra.mxu0 0
        %303 = vmatprep.subr.bf16.mxu0 0
        %304 = vmatpush1.bf16.msra.mxu0 0
        %305 = vmatprep.subr.bf16.mxu0 0
        %306 = vmatpush1.bf16.msra.mxu0 0
        %307 = vmatprep.subr.bf16.mxu0 0
        %308 = vmatpush1.bf16.msra.mxu0 0
        %309 = vmatprep.subr.bf16.mxu0 0
        %310 = vmatpush1.bf16.msra.mxu0 0
        %311 = vmatprep.subr.bf16.mxu0 0
        %312 = vmatpush1.bf16.msra.mxu0 0
        %313 = vmatprep.mubr.bf16.mxu0 0
        %314 = vmatmul.mubr.bf16.gmra.mrb[0].mxu0 %v279
        %v315 = vpop.f32.mrb[0].mxu0
        %v316 = vadd.f32 %v269, %v315
        %v317 = vpop.f32.mrb[0].mxu0
        %v318 = vpop.f32.mrb[0].mxu0
        %v319 = vpop.f32.mrb[0].mxu0
        %320 = vdwg.mxu0
        %v321 = vld [vmem:[%s3] sm:$0xf]
        %v322 = vld [vmem:[%s4] sm:$0xff]
        %324 = vset.pattern.permute.xlu0 0
        %325 = vperm.xlu0 %324, %v322
        %v326 = vpop.permute.xlu0 %325
        %v329 = vsel %vm277, %v321, 0
        %331 = vmatprep.subr.bf16.mxu0 0
        %332 = vmatpush1.bf16.msra.mxu0 %v275
        %333 = vmatprep.subr.bf16.mxu0 0
        %334 = vmatpush1.bf16.msra.mxu0 0
        %335 = vmatprep.subr.bf16.mxu0 0
        %336 = vmatpush1.bf16.msra.mxu0 0
        %337 = vmatprep.subr.bf16.mxu0 0
        %338 = vmatpush1.bf16.msra.mxu0 0
        %339 = vmatprep.subr.bf16.mxu0 0
        %340 = vmatpush1.bf16.msra.mxu0 0
        %341 = vmatprep.subr.bf16.mxu0 0
        %342 = vmatpush1.bf16.msra.mxu0 0
        %343 = vmatprep.subr.bf16.mxu0 0
        %344 = vmatpush1.bf16.msra.mxu0 0
        %345 = vmatprep.subr.bf16.mxu0 0
        %346 = vmatpush1.bf16.msra.mxu0 0
        %347 = vmatprep.subr.bf16.mxu0 0
        %348 = vmatpush1.bf16.msra.mxu0 0
        %349 = vmatprep.subr.bf16.mxu0 0
        %350 = vmatpush1.bf16.msra.mxu0 0
        %351 = vmatprep.subr.bf16.mxu0 0
        %352 = vmatpush1.bf16.msra.mxu0 0
        %353 = vmatprep.subr.bf16.mxu0 0
        %354 = vmatpush1.bf16.msra.mxu0 0
        %355 = vmatprep.subr.bf16.mxu0 0
        %356 = vmatpush1.bf16.msra.mxu0 0
        %357 = vmatprep.subr.bf16.mxu0 0
        %358 = vmatpush1.bf16.msra.mxu0 0
        %359 = vmatprep.subr.bf16.mxu0 0
        %360 = vmatpush1.bf16.msra.mxu0 0
        %361 = vmatprep.subr.bf16.mxu0 0
        %362 = vmatpush1.bf16.msra.mxu0 0
        %363 = vmatprep.mubr.bf16.mxu0 0
        %364 = vmatmul.mubr.bf16.gmra.mrb[0].mxu0 %v329
        %v365 = vpop.f32.mrb[0].mxu0
        %v366 = vadd.f32 %v326, %v365
        %v367 = vpop.f32.mrb[0].mxu0
        %v368 = vpop.f32.mrb[0].mxu0
        %v369 = vpop.f32.mrb[0].mxu0
        %370 = vdwg.mxu0
        %v371 = vpack.c.bf16 %v316, %v316
        %372 = vst [vmem:[%s260] sm:$0xf] %v371
        %v373 = vpack.c.bf16 %v366, %v366
        %s374 = scalar_lea.vmem %s260, 4 [#allocation5]
        %375 = vst [vmem:[%s374] sm:$0xf] %v373
        %s376 = sand.u32 %s156, 1
        %s377 = scalar_lea.sflag [#allocation4], %s376
        %s378 = sand.u32 %s156, 1
        %s379 = smul.addr %s378, 8
        %s380 = scalar_lea.vmem [#allocation5], %s379
        // Predicated region
        $region45: #{tpu_custom_call.1} parent=39 // pred_check
          %p381 = pneg %p166
        $region46: #{tpu_custom_call.1} parent=39 // pred_check_branch
          %383 = sbr.rel (%p381) target = $region48
        $region47: #{tpu_custom_call.1} parent=39 // pred_region
          %s385 = ssub.s32 128, 128
          %386 = vsyncadd %s377, %s385
          %s387 = smul.addr %s26, 4
          %s388 = sadd.s32 %s27, %s387
          %s389 = smul.addr %s388, 64
          %s390 = scalar_lea.hbm %s5, %s389
          %s391 = sshll.u32 %s380, 4
          %s392 = int_to_ptr.vmem [resolvable:$true] %s391
          %397 = dma.vmem_to_hbm [thread:$0]  %s392, 128, %s390, %s377, 64, 128, 4
        $region48: #{tpu_custom_call.1} parent=39 // pred_fallthru
          _
      $region40: #{tpu_custom_call.1} parent=5 // pred_fallthru
        _
      %p398 = scmp.le.s32.totalorder 2, %s17
      // Predicated region
      $region49: #{tpu_custom_call.1} parent=5 // pred_check
        %p399 = pneg %p398
      $region50: #{tpu_custom_call.1} parent=5 // pred_check_branch
        %401 = sbr.rel (%p399) target = $region52
      $region51: #{tpu_custom_call.1} parent=5 // pred_region
        %s402 = ssub.s32 %s17, 2
        // Predicated region
        $region53: #{tpu_custom_call.1} parent=51 // pred_check
          %p403 = pneg %p172
        $region54: #{tpu_custom_call.1} parent=51 // pred_check_branch
          %405 = sbr.rel (%p403) target = $region56
        $region55: #{tpu_custom_call.1} parent=51 // pred_region
          %s406 = sand.u32 %s157, 1
          %s407 = scalar_lea.sflag [#allocation4], %s406
          %s408 = sand.u32 %s157, 1
          %s409 = smul.addr %s408, 8
          %s410 = scalar_lea.vmem [#allocation5], %s409
          %411 = dma.done %s407, 128
        $region56: #{tpu_custom_call.1} parent=51 // pred_fallthru
          _
      $region52: #{tpu_custom_call.1} parent=5 // pred_fallthru
        _
    $region6: #{tpu_custom_call.1} parent=1 // loop_footer
      %s21 = sadd.s32 1, %s17
    $region7: #{tpu_custom_call.1} parent=1 // loop_footer_branch
      %16 = sbr.rel target = $region3
    $region8: #{tpu_custom_call.1} parent=1 // loop_exit
      _
    %412 = vsyncpa [#allocation3], 1
    %s413 = scalar_lea.sflag [#allocation3], 1
    %414 = vsyncpa %s413, 1
    %415 = vsyncpa [#allocation4], 1
    %s416 = scalar_lea.sflag [#allocation4], 1
    %417 = vsyncpa %s416, 1

</llo_original>
